<compile_context>
chip_gen: v6e
topology: v6e:2x2x1
jax: 0.10.0
libtpu: 0.0.40
codegen_flags: <defaults>
</compile_context>

<pallas_src>
import functools

import jax
import jax.numpy as jnp
from jax.experimental import pallas as pl
from jax.experimental.pallas import tpu as pltpu


def _spike_kernel(x_ref, o_ref, *, threshold):
    # One VPU compare + select (bool -> dtype cast), in the native dtype.
    x = x_ref[...]
    thr = jnp.asarray(threshold, dtype=x.dtype)
    o_ref[...] = (x > thr).astype(o_ref.dtype)


def _pick_cols(total, lane_width):
    """Largest multiple of 128 (<= lane_width) that divides `total`, else the
    lane-aligned width that minimizes padding."""
    for c in range(lane_width, 0, -128):
        if total % c == 0:
            return c, False
    # No lane-aligned divisor: pad up to a multiple of `cols`.
    cols = min(lane_width, -(-total // 128) * 128)
    return cols, True


def spiking_activation(
    x,
    threshold=1.0,
    *,
    lane_width=1024,
    max_block_rows=1024,
    vmem_limit_bytes=48 * 1024 * 1024,
):
    """y = where(x > threshold, 1, 0), elementwise, same shape & dtype as x.

    Works for any input rank/shape: the tensor is flattened into a lane-dense
    2-D slab and streamed through VMEM with large double-buffered blocks.
    """
    orig_shape = x.shape
    dtype = x.dtype
    total = int(x.size)
    if total == 0:
        return x

    itemsize = jnp.dtype(dtype).itemsize
    # Sublane packing factor: f32 -> 8, bf16 -> 16, int8/fp8 -> 32 rows / tile.
    sublane = 8 * max(1, 4 // itemsize)

    cols, needs_pad = _pick_cols(total, lane_width)
    padded = -(-total // cols) * cols
    rows = padded // cols

    flat = x.reshape(-1)
    if needs_pad:
        flat = jnp.pad(flat, (0, padded - total))
    x2 = flat.reshape(rows, cols)

    # Block rows: sublane-aligned, <= max_block_rows, and (when possible) small
    # enough that the grid has >= 2 parallel steps (v7x two-TC sharding).
    if rows <= sublane:
        block_rows = rows  # equals full array dim -> satisfies the (8,128) rule
    else:
        block_rows = min(
            max_block_rows, max(sublane, (rows // 2) // sublane * sublane)
        )
    grid = (pl.cdiv(rows, block_rows),)

    kernel = functools.partial(_spike_kernel, threshold=threshold)

    y2 = pl.pallas_call(
        kernel,
        out_shape=jax.ShapeDtypeStruct((rows, cols), dtype),
        grid=grid,
        in_specs=[pl.BlockSpec((block_rows, cols), lambda i: (i, 0))],
        out_specs=pl.BlockSpec((block_rows, cols), lambda i: (i, 0)),
        compiler_params=pltpu.CompilerParams(
            dimension_semantics=("parallel",),
            vmem_limit_bytes=vmem_limit_bytes,
        ),
        cost_estimate=pl.CostEstimate(
            flops=padded,
            transcendentals=0,
            bytes_accessed=2 * padded * itemsize,
        ),
    )(x2)

    y = y2.reshape(-1)
    if needs_pad:
        y = y[:total]
    return y.reshape(orig_shape)


if __name__ == "__main__":
    key = jax.random.PRNGKey(0)
    x = jax.random.normal(key, (2, 4, 16, 16), dtype=jnp.float32) * 2.0

    y = jax.block_until_ready(spiking_activation(x, threshold=1.0))

    # Reference check in plain JAX.
    y_ref = jnp.where(x > 1.0, jnp.ones_like(x), jnp.zeros_like(x))
    assert y.shape == x.shape and y.dtype == x.dtype
    assert bool(jnp.all(y == y_ref))

    # Ragged / padding path sanity check (element count not a multiple of 128).
    x2 = jax.random.normal(jax.random.PRNGKey(1), (3, 5, 7, 11), dtype=jnp.float32)
    y2 = jax.block_until_ready(spiking_activation(x2, threshold=0.25))
    y2_ref = jnp.where(x2 > 0.25, jnp.ones_like(x2), jnp.zeros_like(x2))
    assert y2.shape == x2.shape and y2.dtype == x2.dtype
    assert bool(jnp.all(y2 == y2_ref))

    print("KERNEL_OK")
</pallas_src>

<mosaic_0001>
module attributes {stable_mosaic.version = 11 : i64} {
  func.func @_spike_kernel(%arg0: i32, %arg1: memref<2x1024xf32, #tpu.memory_space<vmem>>, %arg2: memref<2x1024xf32, #tpu.memory_space<vmem>>) attributes {dimension_semantics = [#tpu.dimension_semantics<parallel>], iteration_bounds = array<i64: 1>, scalar_prefetch = 0 : i64, scratch_operands = 0 : i64, tpu.core_type = #tpu.core_type<tc>, window_params = [{transform_indices = @transform_0, window_bounds = array<i64: 2, 1024>}, {transform_indices = @transform_1, window_bounds = array<i64: 2, 1024>}]} {
    %c0 = arith.constant 0 : index
    %c0_0 = arith.constant 0 : index
    %0 = vector.load %arg1[%c0, %c0_0] : memref<2x1024xf32, #tpu.memory_space<vmem>>, vector<2x1024xf32>
    %cst = arith.constant 1.000000e+00 : f32
    %1 = vector.broadcast %cst : f32 to vector<2x1024xf32>
    %2 = arith.cmpf ogt, %0, %1 : vector<2x1024xf32>
    %3 = arith.extui %2 : vector<2x1024xi1> to vector<2x1024xi32>
    %4 = arith.sitofp %3 : vector<2x1024xi32> to vector<2x1024xf32>
    %c0_1 = arith.constant 0 : index
    %c0_2 = arith.constant 0 : index
    %5 = vector.load %arg2[%c0_1, %c0_2] : memref<2x1024xf32, #tpu.memory_space<vmem>>, vector<2x1024xf32>
    tpu.vector_store %arg2[%c0_1, %c0_2], %4 {strides = array<i32>} : memref<2x1024xf32, #tpu.memory_space<vmem>>, vector<2x1024xf32>,
    return
  }
  func.func @transform_0(%arg0: i32) -> (i32, i32) {
    %c0_i32 = arith.constant 0 : i32
    %c0_i32_0 = arith.constant 0 : i32
    return %arg0, %c0_i32 : i32, i32
  }
  func.func @transform_1(%arg0: i32) -> (i32, i32) {
    %c0_i32 = arith.constant 0 : i32
    %c0_i32_0 = arith.constant 0 : i32
    return %arg0, %c0_i32 : i32, i32
  }
}

</mosaic_0001>

<llo_original>
// kernel: tpu_custom_call.1
$region0: #{tpu_custom_call.1}
  #allocation0 [shape = 'u32[]', space=smem, size = 0x4, offset = 0x4, fixed_abs, tag = 'smem constant byte address 0x4 - core index']
  #allocation1 [shape = 'u32[144,128]{1,0:T(1,128)}', space=vmem, size = 0x12000, scoped, tag = 'internal scratch']
  %s0 = inlined_call_operand.hbm [shape: f32[2,1024], index: 0, kind: input, shape index: {}]
  %s1 = inlined_call_operand.hbm [shape: f32[2,1024], index: 1, kind: output, shape index: {}]
  %s2 = sld [smem:[#allocation0]]
  $region18: #{tpu_custom_call.1} parent=0
    _
  %s4 = ssub.s32 1, %s2
  %s5 = scalar_select 0, %s4, %s2
  $region1: #{tpu_custom_call.1} parent=0
    #allocation2 [shape = 'u8[8192]{0}', space=vmem, size = 0x2000, scoped, tag = 'input window, operand 0, single buffered']
    #allocation3 [shape = 's32[1]{0}', space=sflag, size = 0x4, scoped, tag = 'scoped memory for tpu_custom_call.1']
    #allocation4 [shape = 's32[1]{0}', space=sflag, size = 0x4, scoped, tag = 'scoped memory for tpu_custom_call.1']
    #allocation5 [shape = 'u8[8192]{0}', space=vmem, size = 0x2000, scoped, tag = 'output window, operand 0, single buffered']
    %6 = vsyncpa [#allocation3], 0
    %7 = vsyncpa [#allocation4], 0
    // Predicated region
    $region2: #{tpu_custom_call.1} parent=1 // pred_check
      _
    $region3: #{tpu_custom_call.1} parent=1 // pred_check_branch
      %9 = sbr.rel (0) target = $region5
    $region4: #{tpu_custom_call.1} parent=1 // pred_region
      %s11 = ssub.s32 256, 256
      %12 = vsyncadd [#allocation3], %s11
      %s14 = sshll.u32 [#allocation2], 4
      %s15 = int_to_ptr.vmem [resolvable:$true] %s14
      %17 = dma.hbm_to_vmem [thread:$0]  %s0, 256, %s15, [#allocation3]
    $region5: #{tpu_custom_call.1} parent=1 // pred_fallthru
      _
    // Predicated region
    $region6: #{tpu_custom_call.1} parent=1 // pred_check
      _
    $region7: #{tpu_custom_call.1} parent=1 // pred_check_branch
      %19 = sbr.rel (0) target = $region9
    $region8: #{tpu_custom_call.1} parent=1 // pred_region
      %20 = dma.done [#allocation3], 256
    $region9: #{tpu_custom_call.1} parent=1 // pred_fallthru
      _
    %v21 = vld [vmem:[#allocation2] sm:$0xff]
    %v22 = vld [vmem:[#allocation2 + $0x8] sm:$0xff]
    %vm23 = vcmp.gt.f32.partialorder %v21, 1.0
    %vm24 = vcmp.gt.f32.partialorder %v22, 1.0
    %v25 = vsel %vm23, 1, 0
    %v26 = vsel %vm24, 1, 0
    %v27 = vcvt.s32.f32 %v25
    %v28 = vcvt.s32.f32 %v26
    %29 = vst [vmem:[#allocation5] sm:$0xff] %v27
    %30 = vst [vmem:[#allocation5 + $0x8] sm:$0xff] %v28
    // Predicated region
    $region10: #{tpu_custom_call.1} parent=1 // pred_check
      _
    $region11: #{tpu_custom_call.1} parent=1 // pred_check_branch
      %32 = sbr.rel (0) target = $region13
    $region12: #{tpu_custom_call.1} parent=1 // pred_region
      %s34 = ssub.s32 256, 256
      %35 = vsyncadd [#allocation4], %s34
      %s37 = sshll.u32 [#allocation5], 4
      %s38 = int_to_ptr.vmem [resolvable:$true] %s37
      %40 = dma.vmem_to_hbm [thread:$0]  %s38, 256, %s1, [#allocation4]
    $region13: #{tpu_custom_call.1} parent=1 // pred_fallthru
      _
    // Predicated region
    $region14: #{tpu_custom_call.1} parent=1 // pred_check
      _
    $region15: #{tpu_custom_call.1} parent=1 // pred_check_branch
      %42 = sbr.rel (0) target = $region17
    $region16: #{tpu_custom_call.1} parent=1 // pred_region
      %43 = dma.done [#allocation4], 256
    $region17: #{tpu_custom_call.1} parent=1 // pred_fallthru
      _
    %44 = vsyncpa [#allocation3], 1
    %45 = vsyncpa [#allocation4], 1

</llo_original>
